<compile_context>
chip_gen: v7x
topology: tpu7x:2x2x1
jax: 0.10.0
libtpu: 0.0.40
codegen_flags: <defaults>
</compile_context>

<pallas_src>
import functools

import jax
import jax.numpy as jnp
from jax.experimental import pallas as pl
from jax.experimental.pallas import tpu as pltpu


def _round_up(x, m):
    return (x + m - 1) // m * m


_SQRT_2_OVER_PI = 0.7978845608028654


def _gelu(x):
    # tanh-approximation GELU (tanh runs on the EUP slot).
    # TODO(synk): submodule bodies aren't in the spec; if the original uses exact
    # (erf) GELU the outputs differ at ~1e-3 level.
    return 0.5 * x * (1.0 + jnp.tanh(_SQRT_2_OVER_PI * (x + 0.044715 * x * x * x)))


def _sigmoid(x):
    # exp goes to the EUP slot; exact reciprocal kept (approx=True would risk the
    # 1e-4 correctness check and only helps if the VALU slot ever binds).
    return 1.0 / (1.0 + jnp.exp(-x))


def _mxu_is_256_wide():
    """True on v6e / v7x-class chips (2x256^2 MXU); False on v5e/v5p/v4 (128-wide)."""
    try:
        kind = jax.devices()[0].device_kind.lower()
    except Exception:
        return True
    return not any(tag in kind for tag in ("v2", "v3", "v4", "v5"))


# ---------------------------------------------------------------------------
# Kernel bodies (one row tile of the forward).
# ---------------------------------------------------------------------------

def _amd_kernel_fused2(x_ref, w1_ref, b1_ref, w2_ref, b2_ref, o_ref, *, embed):
    """Layer-2 fused as a block-diagonal (2H, 2E) weight (v6e / v7x).

    x_ref : (TN, E)   f32    token embeddings (cast to bf16 in-kernel)
    w1_ref: (E, 2H)   bf16   [W1_motion | W1_confidence]
    b1_ref: (1, 2H)   f32
    w2_ref: (2H, 2E)  bf16   blockdiag(W2_motion, W2_confidence)
    b2_ref: (1, 2E)   f32
    o_ref : (TN, E)          motion * confidence
    """
    x = x_ref[...].astype(jnp.bfloat16)

    h = jnp.dot(x, w1_ref[...], preferred_element_type=jnp.float32)
    h_bf = _gelu(h + b1_ref[...]).astype(jnp.bfloat16)                  # (TN, 2H)

    y = jnp.dot(h_bf, w2_ref[...], preferred_element_type=jnp.float32) + b2_ref[...]
    motion = y[:, :embed]                                                # (TN, E)
    confidence = _sigmoid(y[:, embed:])                                  # (TN, E)

    o_ref[...] = (motion * confidence).astype(o_ref.dtype)


def _amd_kernel_split2(x_ref, w1_ref, b1_ref, w2m_ref, b2m_ref, w2c_ref, b2c_ref,
                       o_ref, *, hidden):
    """Layer-2 kept as two (H, E) matmuls (v5e: 128-wide MXU tiles already full)."""
    x = x_ref[...].astype(jnp.bfloat16)

    h = jnp.dot(x, w1_ref[...], preferred_element_type=jnp.float32)
    h_bf = _gelu(h + b1_ref[...]).astype(jnp.bfloat16)                  # (TN, 2H)

    hm = h_bf[:, :hidden]
    hc = h_bf[:, hidden:]

    motion = jnp.dot(hm, w2m_ref[...],
                     preferred_element_type=jnp.float32) + b2m_ref[...]
    confidence = _sigmoid(jnp.dot(hc, w2c_ref[...],
                                  preferred_element_type=jnp.float32) + b2c_ref[...])

    o_ref[...] = (motion * confidence).astype(o_ref.dtype)


# ---------------------------------------------------------------------------
# One-time weight preparation (hoisted out of the forward path).
# ---------------------------------------------------------------------------

def prepare_decoder_params(params, *, fuse_layer2=None):
    """Fuse / cast the weights once at parameter-build time (not per forward)."""
    w1m, b1m, w2m, b2m = params["motion"]
    w1c, b1c, w2c, b2c = params["confidence"]
    E, H = w1m.shape
    if fuse_layer2 is None:
        fuse_layer2 = _mxu_is_256_wide()

    w1 = jnp.concatenate([w1m, w1c], axis=1).astype(jnp.bfloat16)            # (E, 2H)
    b1 = jnp.concatenate([b1m, b1c], axis=0)[None, :].astype(jnp.float32)    # (1, 2H)

    prepared = {"E": int(E), "H": int(H), "fused2": bool(fuse_layer2),
                "w1": w1, "b1": b1}
    if fuse_layer2:
        z = jnp.zeros((H, E), dtype=w2m.dtype)
        w2 = jnp.block([[w2m, z], [z, w2c]]).astype(jnp.bfloat16)            # (2H, 2E)
        b2 = jnp.concatenate([b2m, b2c], axis=0)[None, :].astype(jnp.float32)
        prepared.update(w2=w2, b2=b2)
    else:
        prepared.update(
            w2m=w2m.astype(jnp.bfloat16), b2m=b2m[None, :].astype(jnp.float32),
            w2c=w2c.astype(jnp.bfloat16), b2c=b2c[None, :].astype(jnp.float32))
    return prepared


# ---------------------------------------------------------------------------
# Forward pass.
# ---------------------------------------------------------------------------

def adaptive_motion_decoder(embeddings, prepared, *, row_tile=512, out_dtype=None):
    """embeddings: (..., E).  Returns motion_prediction * confidence_scores."""
    E, H = prepared["E"], prepared["H"]
    assert embeddings.shape[-1] == E
    if out_dtype is None:
        out_dtype = embeddings.dtype   # pass jnp.bfloat16 to halve writeback bytes

    x2 = embeddings.reshape(-1, E)     # no pad, no cast: kernel reads f32 directly
    n_rows = x2.shape[0]

    # Row tile: multiple of 8 (f32 sublane tile); large by default to amortize the
    # per-grid-step overhead, shrunk for tiny inputs so >= 2 grid steps exist
    # (keeps both v7x TensorCores busy).  Pallas masks the partial last block.
    tn = min(row_tile, _round_up(n_rows, 8))
    if n_rows > 8 and pl.cdiv(n_rows, tn) < 2:
        tn = _round_up(pl.cdiv(n_rows, 2), 8)
    grid = (pl.cdiv(n_rows, tn),)

    rep = lambda i: (0, 0)             # weights/biases: same block every grid step

    if prepared["fused2"]:
        kernel = functools.partial(_amd_kernel_fused2, embed=E)
        weights = (prepared["w1"], prepared["b1"], prepared["w2"], prepared["b2"])
        w_specs = [pl.BlockSpec((E, 2 * H), rep),
                   pl.BlockSpec((1, 2 * H), rep),
                   pl.BlockSpec((2 * H, 2 * E), rep),
                   pl.BlockSpec((1, 2 * E), rep)]
    else:
        kernel = functools.partial(_amd_kernel_split2, hidden=H)
        weights = (prepared["w1"], prepared["b1"], prepared["w2m"], prepared["b2m"],
                   prepared["w2c"], prepared["b2c"])
        w_specs = [pl.BlockSpec((E, 2 * H), rep),
                   pl.BlockSpec((1, 2 * H), rep),
                   pl.BlockSpec((H, E), rep),
                   pl.BlockSpec((1, E), rep),
                   pl.BlockSpec((H, E), rep),
                   pl.BlockSpec((1, E), rep)]

    # Explicit VMEM budget: double-buffered activation/out tiles + weight slabs,
    # with headroom; capped at 64 MiB so it also respects v7x physical VMEM.
    w_bytes = sum(int(w.size) * w.dtype.itemsize for w in weights)
    act_bytes = 2 * tn * E * (x2.dtype.itemsize + jnp.dtype(out_dtype).itemsize)
    vmem_limit = int(min(max(2 * (act_bytes + 2 * w_bytes) + (4 << 20), 32 << 20),
                         64 << 20))

    out = pl.pallas_call(
        kernel,
        out_shape=jax.ShapeDtypeStruct((n_rows, E), out_dtype),
        grid_spec=pltpu.PrefetchScalarGridSpec(
            num_scalar_prefetch=0,
            grid=grid,
            in_specs=[pl.BlockSpec((tn, E), lambda i: (i, 0))] + w_specs,
            out_specs=pl.BlockSpec((tn, E), lambda i: (i, 0)),
        ),
        compiler_params=pltpu.CompilerParams(
            dimension_semantics=("parallel",),   # independent row tiles
            vmem_limit_bytes=vmem_limit,
        ),
    )(x2, *weights)

    return out.reshape(embeddings.shape[:-1] + (E,))


# ---------------------------------------------------------------------------
# Pure-JAX reference mirroring the kernel numerics (bf16 MXU inputs, f32 acc).
# ---------------------------------------------------------------------------

def _reference(embeddings, params):
    w1m, b1m, w2m, b2m = params["motion"]
    w1c, b1c, w2c, b2c = params["confidence"]
    x = embeddings.astype(jnp.bfloat16)

    hm = _gelu(jnp.dot(x, w1m.astype(jnp.bfloat16),
                       preferred_element_type=jnp.float32) + b1m)
    hc = _gelu(jnp.dot(x, w1c.astype(jnp.bfloat16),
                       preferred_element_type=jnp.float32) + b1c)
    motion = jnp.dot(hm.astype(jnp.bfloat16), w2m.astype(jnp.bfloat16),
                     preferred_element_type=jnp.float32) + b2m
    confidence = _sigmoid(jnp.dot(hc.astype(jnp.bfloat16), w2c.astype(jnp.bfloat16),
                                  preferred_element_type=jnp.float32) + b2c)
    return motion * confidence


if __name__ == "__main__":
    B, T = 2, 8
    E = 128   # embedding_dim (multiple of 128 -> lane-dense vregs / stores)
    H = 128   # MLP hidden width of both heads

    key = jax.random.PRNGKey(0)
    ks = jax.random.split(key, 9)

    embeddings = jax.random.normal(ks[0], (B, T, E), dtype=jnp.float32)
    s1 = 1.0 / (E ** 0.5)
    s2 = 1.0 / (H ** 0.5)
    params = {
        "motion": (
            jax.random.normal(ks[1], (E, H), jnp.float32) * s1,
            jax.random.normal(ks[2], (H,), jnp.float32) * 0.02,
            jax.random.normal(ks[3], (H, E), jnp.float32) * s2,
            jax.random.normal(ks[4], (E,), jnp.float32) * 0.02,
        ),
        "confidence": (
            jax.random.normal(ks[5], (E, H), jnp.float32) * s1,
            jax.random.normal(ks[6], (H,), jnp.float32) * 0.02,
            jax.random.normal(ks[7], (H, E), jnp.float32) * s2,
            jax.random.normal(ks[8], (E,), jnp.float32) * 0.02,
        ),
    }

    prepared = prepare_decoder_params(params)          # one-time weight prep
    out = adaptive_motion_decoder(embeddings, prepared)
    out = jax.block_until_ready(out)

    ref = _reference(embeddings, params)
    assert out.shape == ref.shape, (out.shape, ref.shape)
    max_err = float(jnp.max(jnp.abs(out - ref)))
    assert jnp.allclose(out, ref, rtol=1e-4, atol=1e-4), max_err

    print("KERNEL_OK")
</pallas_src>

<mosaic_0001>
module attributes {stable_mosaic.version = 11 : i64} {
  func.func @_amd_kernel_fused2(%arg0: i32, %arg1: memref<8x128xf32, #tpu.memory_space<vmem>>, %arg2: memref<128x256xbf16, #tpu.memory_space<vmem>>, %arg3: memref<1x256xf32, #tpu.memory_space<vmem>>, %arg4: memref<256x256xbf16, #tpu.memory_space<vmem>>, %arg5: memref<1x256xf32, #tpu.memory_space<vmem>>, %arg6: memref<8x128xf32, #tpu.memory_space<vmem>>) attributes {dimension_semantics = [#tpu.dimension_semantics<parallel>], iteration_bounds = array<i64: 2>, scalar_prefetch = 0 : i64, scratch_operands = 0 : i64, tpu.core_type = #tpu.core_type<tc>, window_params = [{transform_indices = @transform_0, window_bounds = array<i64: 8, 128>}, {pipeline_mode = #tpu.pipeline_mode<synchronous>, transform_indices = @transform_1, window_bounds = array<i64: 128, 256>}, {pipeline_mode = #tpu.pipeline_mode<synchronous>, transform_indices = @transform_2, window_bounds = array<i64: 1, 256>}, {pipeline_mode = #tpu.pipeline_mode<synchronous>, transform_indices = @transform_3, window_bounds = array<i64: 256, 256>}, {pipeline_mode = #tpu.pipeline_mode<synchronous>, transform_indices = @transform_4, window_bounds = array<i64: 1, 256>}, {transform_indices = @transform_5, window_bounds = array<i64: 8, 128>}]} {
    %c0 = arith.constant 0 : index
    %c0_0 = arith.constant 0 : index
    %0 = vector.load %arg1[%c0, %c0_0] : memref<8x128xf32, #tpu.memory_space<vmem>>, vector<8x128xf32>
    %1 = arith.truncf %0 : vector<8x128xf32> to vector<8x128xbf16>
    %c0_1 = arith.constant 0 : index
    %c0_2 = arith.constant 0 : index
    %2 = vector.load %arg2[%c0_1, %c0_2] : memref<128x256xbf16, #tpu.memory_space<vmem>>, vector<128x256xbf16>
    %cst = arith.constant dense<0.000000e+00> : vector<8x256xf32>
    %3 = tpu.matmul %1, %2, %cst {dimension_numbers = #tpu.dot_dimension_numbers<[1], [0], [0], [1], [0, 0, 1, 1], [], []>} : vector<8x128xbf16>, vector<128x256xbf16>, vector<8x256xf32> -> vector<8x256xf32>
    %c0_3 = arith.constant 0 : index
    %c0_4 = arith.constant 0 : index
    %4 = vector.load %arg3[%c0_3, %c0_4] : memref<1x256xf32, #tpu.memory_space<vmem>>, vector<1x256xf32>
    %5 = vector.broadcast %4 : vector<1x256xf32> to vector<8x256xf32>
    %6 = arith.addf %3, %5 : vector<8x256xf32>
    %cst_5 = arith.constant 5.000000e-01 : f32
    %7 = vector.broadcast %cst_5 : f32 to vector<8x256xf32>
    %8 = arith.mulf %7, %6 : vector<8x256xf32>
    %cst_6 = arith.constant 4.471500e-02 : f32
    %9 = vector.broadcast %cst_6 : f32 to vector<8x256xf32>
    %10 = arith.mulf %9, %6 : vector<8x256xf32>
    %11 = arith.mulf %10, %6 : vector<8x256xf32>
    %12 = arith.mulf %11, %6 : vector<8x256xf32>
    %13 = arith.addf %6, %12 : vector<8x256xf32>
    %cst_7 = arith.constant 0.797884583 : f32
    %14 = vector.broadcast %cst_7 : f32 to vector<8x256xf32>
    %15 = arith.mulf %14, %13 : vector<8x256xf32>
    %16 = math.tanh %15 : vector<8x256xf32>
    %cst_8 = arith.constant 1.000000e+00 : f32
    %17 = vector.broadcast %cst_8 : f32 to vector<8x256xf32>
    %18 = arith.addf %17, %16 : vector<8x256xf32>
    %19 = arith.mulf %8, %18 : vector<8x256xf32>
    %20 = arith.truncf %19 : vector<8x256xf32> to vector<8x256xbf16>
    %c0_9 = arith.constant 0 : index
    %c0_10 = arith.constant 0 : index
    %21 = vector.load %arg4[%c0_9, %c0_10] : memref<256x256xbf16, #tpu.memory_space<vmem>>, vector<256x256xbf16>
    %cst_11 = arith.constant dense<0.000000e+00> : vector<8x256xf32>
    %22 = tpu.matmul %20, %21, %cst_11 {dimension_numbers = #tpu.dot_dimension_numbers<[1], [0], [0], [1], [0, 0, 1, 1], [], []>} : vector<8x256xbf16>, vector<256x256xbf16>, vector<8x256xf32> -> vector<8x256xf32>
    %c0_12 = arith.constant 0 : index
    %c0_13 = arith.constant 0 : index
    %23 = vector.load %arg5[%c0_12, %c0_13] : memref<1x256xf32, #tpu.memory_space<vmem>>, vector<1x256xf32>
    %24 = vector.broadcast %23 : vector<1x256xf32> to vector<8x256xf32>
    %25 = arith.addf %22, %24 : vector<8x256xf32>
    %26 = vector.extract_strided_slice %25 {offsets = [0, 0], sizes = [8, 128], strides = [1, 1]} : vector<8x256xf32> to vector<8x128xf32>
    %27 = vector.extract_strided_slice %25 {offsets = [0, 128], sizes = [8, 128], strides = [1, 1]} : vector<8x256xf32> to vector<8x128xf32>
    %cst_14 = arith.constant 0.000000e+00 : f32
    %28 = vector.broadcast %cst_14 : f32 to vector<8x128xf32>
    %29 = arith.subf %28, %27 : vector<8x128xf32>
    %30 = math.exp %29 : vector<8x128xf32>
    %cst_15 = arith.constant 1.000000e+00 : f32
    %31 = vector.broadcast %cst_15 : f32 to vector<8x128xf32>
    %32 = arith.addf %31, %30 : vector<8x128xf32>
    %cst_16 = arith.constant 1.000000e+00 : f32
    %33 = vector.broadcast %cst_16 : f32 to vector<8x128xf32>
    %34 = arith.divf %33, %32 : vector<8x128xf32>
    %35 = arith.mulf %26, %34 : vector<8x128xf32>
    %c0_17 = arith.constant 0 : index
    %c0_18 = arith.constant 0 : index
    %36 = vector.load %arg6[%c0_17, %c0_18] : memref<8x128xf32, #tpu.memory_space<vmem>>, vector<8x128xf32>
    tpu.vector_store %arg6[%c0_17, %c0_18], %35 {strides = array<i32>} : memref<8x128xf32, #tpu.memory_space<vmem>>, vector<8x128xf32>,
    return
  }
  func.func @transform_0(%arg0: i32) -> (i32, i32) {
    %c0_i32 = arith.constant 0 : i32
    %c0_i32_0 = arith.constant 0 : i32
    return %arg0, %c0_i32 : i32, i32
  }
  func.func @transform_1(%arg0: i32) -> (i32, i32) {
    %c0_i32 = arith.constant 0 : i32
    %c0_i32_0 = arith.constant 0 : i32
    %c0_i32_1 = arith.constant 0 : i32
    return %c0_i32, %c0_i32_0 : i32, i32
  }
  func.func @transform_2(%arg0: i32) -> (i32, i32) {
    %c0_i32 = arith.constant 0 : i32
    %c0_i32_0 = arith.constant 0 : i32
    %c0_i32_1 = arith.constant 0 : i32
    return %c0_i32, %c0_i32_0 : i32, i32
  }
  func.func @transform_3(%arg0: i32) -> (i32, i32) {
    %c0_i32 = arith.constant 0 : i32
    %c0_i32_0 = arith.constant 0 : i32
    %c0_i32_1 = arith.constant 0 : i32
    return %c0_i32, %c0_i32_0 : i32, i32
  }
  func.func @transform_4(%arg0: i32) -> (i32, i32) {
    %c0_i32 = arith.constant 0 : i32
    %c0_i32_0 = arith.constant 0 : i32
    %c0_i32_1 = arith.constant 0 : i32
    return %c0_i32, %c0_i32_0 : i32, i32
  }
  func.func @transform_5(%arg0: i32) -> (i32, i32) {
    %c0_i32 = arith.constant 0 : i32
    %c0_i32_0 = arith.constant 0 : i32
    return %arg0, %c0_i32 : i32, i32
  }
}

</mosaic_0001>

<llo_original>
// kernel: tpu_custom_call.1
$region0: #{tpu_custom_call.1}
  #allocation0 [shape = 'u32[]', space=smem, size = 0x4, offset = 0x4, fixed_abs, tag = 'smem constant byte address 0x4 - core index']
  #allocation1 [shape = 'u32[144,128]{1,0:T(1,128)}', space=vmem, size = 0x12000, scoped, tag = 'internal scratch']
  %s0 = inlined_call_operand.hbm [shape: f32[16,128], index: 0, kind: input, shape index: {}]
  %s1 = inlined_call_operand.hbm [shape: bf16[128,256], index: 1, kind: input, shape index: {}]
  %s2 = inlined_call_operand.vmem [shape: f32[1,256], index: 2, kind: input, shape index: {}]
  %s3 = inlined_call_operand.hbm [shape: bf16[256,256], index: 3, kind: input, shape index: {}]
  %s4 = inlined_call_operand.vmem [shape: f32[1,256], index: 4, kind: input, shape index: {}]
  %s5 = inlined_call_operand.hbm [shape: f32[16,128], index: 5, kind: output, shape index: {}]
  %s6 = sld [smem:[#allocation0]]
  $region65: #{tpu_custom_call.1} parent=0
    _
  %s8 = ssub.s32 1, %s6
  %s9 = scalar_select 0, %s8, %s6
  $region1: #{tpu_custom_call.1} parent=0
    #allocation2 [shape = 'u8[8192]{0}', space=vmem, size = 0x2000, scoped, tag = 'input window, operand 0']
    #allocation3 [shape = 's32[2]{0}', space=sflag, size = 0x8, scoped, tag = 'scoped memory for tpu_custom_call.1']
    #allocation4 [shape = 's32[2]{0}', space=sflag, size = 0x8, scoped, tag = 'scoped memory for tpu_custom_call.1']
    #allocation5 [shape = 'u8[65536]{0}', space=vmem, size = 0x10000, scoped, tag = 'input window, operand 1, single buffered']
    #allocation6 [shape = 's32[1]{0}', space=sflag, size = 0x4, scoped, tag = 'scoped memory for tpu_custom_call.1']
    #allocation7 [shape = 'u8[131072]{0}', space=vmem, size = 0x20000, scoped, tag = 'input window, operand 3, single buffered']
    #allocation8 [shape = 'u8[8192]{0}', space=vmem, size = 0x2000, scoped, tag = 'output window, operand 0']
    %10 = vsyncpa [#allocation3], 0
    %s11 = scalar_lea.sflag [#allocation3], 1
    %12 = vsyncpa %s11, 0
    %13 = vsyncpa [#allocation6], 0
    %14 = vsyncpa [#allocation4], 0
    %s15 = scalar_lea.sflag [#allocation4], 1
    %16 = vsyncpa %s15, 0
    loop: start=0, step=1, limit=4
    $region2: #{tpu_custom_call.1} parent=1 // loop_pre_header
      _
    $region3: #{tpu_custom_call.1} parent=1 // loop_header
      %s18 = sphi 0, %s22
      %p19 = scmp.ge.s32.totalorder %s18, 4
      %s28 = sphi 0, %s30
      %s31 = sphi 0, %s28
      %s32 = sphi 0, %s31
      %s48 = sphi 0, %s32
      %s52 = sphi 0, %s52
      %s54 = sphi 0, %s52
      %s55 = sphi 0, %s54
      %s69 = sphi 0, %s55
      %s73 = sphi 0, %s73
      %s75 = sphi 0, %s73
      %s76 = sphi 0, %s75
      %s90 = sphi 0, %s76
      %s94 = sphi 0, %s94
      %s96 = sphi 0, %s94
      %s97 = sphi 0, %s96
      %s111 = sphi 0, %s97
      %s115 = sphi 0, %s115
      %s117 = sphi 0, %s115
      %s118 = sphi 0, %s117
      %s132 = sphi 0, %s118
      %s138 = sphi 0, %s140
      %s141 = sphi 0, %s138
      %s142 = sphi 0, %s141
      %s158 = sphi 0, %s142
    $region4: #{tpu_custom_call.1} parent=1 // loop_header_branch
      %21 = sbr.rel (%p19) target = $region8
    $region5: #{tpu_custom_call.1} parent=1 // loop_body
      %s23 = ssub.s32 %s18, 1
      %s24 = ssub.s32 %s18, 2
      %s25 = sadd.s32 %s18, 1
      %s26 = ssub.s32 %s18, %s25
      %p27 = scmp.eq.s32.totalorder %s26, 0
      %s29 = sadd.s32 %s28, 1
      %s30 = scalar_select %p27, %s28, %s29
      %p33 = pneg %p27
      %p34 = scmp.eq.s32.totalorder %s18, 1
      %p35 = por %p33, %p34
      %p36 = scmp.ne.s32.totalorder %s28, %s31
      %p37 = scmp.eq.s32.totalorder %s18, 0
      %p38 = por %p36, %p37
      %p39 = scmp.ne.s32.totalorder %s28, %s31
      %p40 = scmp.eq.s32.totalorder %s23, 1
      %p41 = por %p39, %p40
      %p42 = scmp.ne.s32.totalorder %s31, %s32
      %p43 = scmp.eq.s32.totalorder %s23, 0
      %p44 = por %p42, %p43
      %p45 = scmp.ne.s32.totalorder %s31, %s32
      %p46 = scmp.eq.s32.totalorder %s24, 1
      %p47 = por %p45, %p46
      %p49 = scmp.ne.s32.totalorder %s32, %s48
      %p50 = scmp.eq.s32.totalorder %s24, 0
      %p51 = por %p49, %p50
      %s53 = sadd.s32 %s52, 1
      %p56 = scmp.eq.s32.totalorder %s18, 1
      %p57 = scmp.ne.s32.totalorder %s52, %s54
      %p58 = scmp.eq.s32.totalorder %s18, 0
      %p59 = por %p57, %p58
      %p60 = scmp.ne.s32.totalorder %s52, %s54
      %p61 = scmp.eq.s32.totalorder %s23, 1
      %p62 = por %p60, %p61
      %p63 = scmp.ne.s32.totalorder %s54, %s55
      %p64 = scmp.eq.s32.totalorder %s23, 0
      %p65 = por %p63, %p64
      %p66 = scmp.ne.s32.totalorder %s54, %s55
      %p67 = scmp.eq.s32.totalorder %s24, 1
      %p68 = por %p66, %p67
      %p70 = scmp.ne.s32.totalorder %s55, %s69
      %p71 = scmp.eq.s32.totalorder %s24, 0
      %p72 = por %p70, %p71
      %s74 = sadd.s32 %s73, 1
      %p77 = scmp.eq.s32.totalorder %s18, 1
      %p78 = scmp.ne.s32.totalorder %s73, %s75
      %p79 = scmp.eq.s32.totalorder %s18, 0
      %p80 = por %p78, %p79
      %p81 = scmp.ne.s32.totalorder %s73, %s75
      %p82 = scmp.eq.s32.totalorder %s23, 1
      %p83 = por %p81, %p82
      %p84 = scmp.ne.s32.totalorder %s75, %s76
      %p85 = scmp.eq.s32.totalorder %s23, 0
      %p86 = por %p84, %p85
      %p87 = scmp.ne.s32.totalorder %s75, %s76
      %p88 = scmp.eq.s32.totalorder %s24, 1
      %p89 = por %p87, %p88
      %p91 = scmp.ne.s32.totalorder %s76, %s90
      %p92 = scmp.eq.s32.totalorder %s24, 0
      %p93 = por %p91, %p92
      %s95 = sadd.s32 %s94, 1
      %p98 = scmp.eq.s32.totalorder %s18, 1
      %p99 = scmp.ne.s32.totalorder %s94, %s96
      %p100 = scmp.eq.s32.totalorder %s18, 0
      %p101 = por %p99, %p100
      %p102 = scmp.ne.s32.totalorder %s94, %s96
      %p103 = scmp.eq.s32.totalorder %s23, 1
      %p104 = por %p102, %p103
      %p105 = scmp.ne.s32.totalorder %s96, %s97
      %p106 = scmp.eq.s32.totalorder %s23, 0
      %p107 = por %p105, %p106
      %p108 = scmp.ne.s32.totalorder %s96, %s97
      %p109 = scmp.eq.s32.totalorder %s24, 1
      %p110 = por %p108, %p109
      %p112 = scmp.ne.s32.totalorder %s97, %s111
      %p113 = scmp.eq.s32.totalorder %s24, 0
      %p114 = por %p112, %p113
      %s116 = sadd.s32 %s115, 1
      %p119 = scmp.eq.s32.totalorder %s18, 1
      %p120 = scmp.ne.s32.totalorder %s115, %s117
      %p121 = scmp.eq.s32.totalorder %s18, 0
      %p122 = por %p120, %p121
      %p123 = scmp.ne.s32.totalorder %s115, %s117
      %p124 = scmp.eq.s32.totalorder %s23, 1
      %p125 = por %p123, %p124
      %p126 = scmp.ne.s32.totalorder %s117, %s118
      %p127 = scmp.eq.s32.totalorder %s23, 0
      %p128 = por %p126, %p127
      %p129 = scmp.ne.s32.totalorder %s117, %s118
      %p130 = scmp.eq.s32.totalorder %s24, 1
      %p131 = por %p129, %p130
      %p133 = scmp.ne.s32.totalorder %s118, %s132
      %p134 = scmp.eq.s32.totalorder %s24, 0
      %p135 = por %p133, %p134
      %s136 = ssub.s32 %s18, %s25
      %p137 = scmp.eq.s32.totalorder %s136, 0
      %s139 = sadd.s32 %s138, 1
      %s140 = scalar_select %p137, %s138, %s139
      %p143 = pneg %p137
      %p144 = scmp.eq.s32.totalorder %s18, 1
      %p145 = por %p143, %p144
      %p146 = scmp.ne.s32.totalorder %s138, %s141
      %p147 = scmp.eq.s32.totalorder %s18, 0
      %p148 = por %p146, %p147
      %p149 = scmp.ne.s32.totalorder %s138, %s141
      %p150 = scmp.eq.s32.totalorder %s23, 1
      %p151 = por %p149, %p150
      %p152 = scmp.ne.s32.totalorder %s141, %s142
      %p153 = scmp.eq.s32.totalorder %s23, 0
      %p154 = por %p152, %p153
      %p155 = scmp.ne.s32.totalorder %s141, %s142
      %p156 = scmp.eq.s32.totalorder %s24, 1
      %p157 = por %p155, %p156
      %p159 = scmp.ne.s32.totalorder %s142, %s158
      %p160 = scmp.eq.s32.totalorder %s24, 0
      %p161 = por %p159, %p160
      %p162 = scmp.le.s32.totalorder 1, %s18
      %p163 = scmp.lt.s32.totalorder %s18, 3
      %p164 = pnand %p162, %p163
      %p165 = pneg %p164
      // Predicated region
      $region9: #{tpu_custom_call.1} parent=5 // pred_check
        _
      $region10: #{tpu_custom_call.1} parent=5 // pred_check_branch
        %167 = sbr.rel (%p164) target = $region12
      $region11: #{tpu_custom_call.1} parent=5 // pred_region
        %s168 = ssub.s32 %s18, 1
        // Predicated region
        $region13: #{tpu_custom_call.1} parent=11 // pred_check
          %p169 = pneg %p65
        $region14: #{tpu_custom_call.1} parent=11 // pred_check_branch
          %171 = sbr.rel (%p169) target = $region16
        $region15: #{tpu_custom_call.1} parent=11 // pred_region
          %s173 = ssub.s32 2048, 2048
          %174 = vsyncadd [#allocation6], %s173
          %s175 = sshll.u32 [#allocation5], 4
          %s176 = int_to_ptr.vmem [resolvable:$true] %s175
          %181 = dma.hbm_to_vmem [thread:$0]  %s1, 2048, %s176, [#allocation6], 128, 128, 8
        $region16: #{tpu_custom_call.1} parent=11 // pred_fallthru
          _
        // Predicated region
        $region17: #{tpu_custom_call.1} parent=11 // pred_check
          %p182 = pneg %p86
        $region18: #{tpu_custom_call.1} parent=11 // pred_check_branch
          %184 = sbr.rel (%p182) target = $region20
        $region19: #{tpu_custom_call.1} parent=11 // pred_region
          _
        $region20: #{tpu_custom_call.1} parent=11 // pred_fallthru
          _
        // Predicated region
        $region21: #{tpu_custom_call.1} parent=11 // pred_check
          %p185 = pneg %p107
        $region22: #{tpu_custom_call.1} parent=11 // pred_check_branch
          %187 = sbr.rel (%p185) target = $region24
        $region23: #{tpu_custom_call.1} parent=11 // pred_region
          %s189 = ssub.s32 4096, 4096
          %190 = vsyncadd [#allocation6], %s189
          %s191 = sshll.u32 [#allocation7], 4
          %s192 = int_to_ptr.vmem [resolvable:$true] %s191
          %197 = dma.hbm_to_vmem [thread:$0]  %s3, 4096, %s192, [#allocation6], 128, 128, 8
        $region24: #{tpu_custom_call.1} parent=11 // pred_fallthru
          _
        // Predicated region
        $region25: #{tpu_custom_call.1} parent=11 // pred_check
          %p198 = pneg %p128
        $region26: #{tpu_custom_call.1} parent=11 // pred_check_branch
          %200 = sbr.rel (%p198) target = $region28
        $region27: #{tpu_custom_call.1} parent=11 // pred_region
          _
        $region28: #{tpu_custom_call.1} parent=11 // pred_fallthru
          _
      $region12: #{tpu_custom_call.1} parent=5 // pred_fallthru
        _
      %p201 = scmp.lt.s32.totalorder %s18, 2
      // Predicated region
      $region29: #{tpu_custom_call.1} parent=5 // pred_check
        %p202 = pneg %p201
      $region30: #{tpu_custom_call.1} parent=5 // pred_check_branch
        %204 = sbr.rel (%p202) target = $region32
      $region31: #{tpu_custom_call.1} parent=5 // pred_region
        // Predicated region
        $region33: #{tpu_custom_call.1} parent=31 // pred_check
          %p205 = pneg %p38
        $region34: #{tpu_custom_call.1} parent=31 // pred_check_branch
          %207 = sbr.rel (%p205) target = $region36
        $region35: #{tpu_custom_call.1} parent=31 // pred_region
          %s208 = sand.u32 %s28, 1
          %s209 = scalar_lea.sflag [#allocation3], %s208
          %s210 = sand.u32 %s28, 1
          %s211 = smul.addr %s210, 8
          %s212 = scalar_lea.vmem [#allocation2], %s211
          %s214 = ssub.s32 128, 128
          %215 = vsyncadd %s209, %s214
          %s216 = smul.addr %s18, 128
          %s217 = scalar_lea.hbm %s0, %s216
          %s219 = sshll.u32 %s212, 4
          %s220 = int_to_ptr.vmem [resolvable:$true] %s219
          %222 = dma.hbm_to_vmem [thread:$0]  %s217, 128, %s220, %s209
        $region36: #{tpu_custom_call.1} parent=31 // pred_fallthru
          _
      $region32: #{tpu_custom_call.1} parent=5 // pred_fallthru
        _
      %p223 = scmp.le.s32.totalorder 1, %s18
      %p224 = scmp.lt.s32.totalorder %s18, 3
      %p225 = pnand %p223, %p224
      %p226 = pneg %p225
      // Predicated region
      $region37: #{tpu_custom_call.1} parent=5 // pred_check
        _
      $region38: #{tpu_custom_call.1} parent=5 // pred_check_branch
        %228 = sbr.rel (%p225) target = $region40
      $region39: #{tpu_custom_call.1} parent=5 // pred_region
        %s229 = ssub.s32 %s18, 1
        %s230 = sand.u32 %s31, 1
        %s231 = scalar_lea.sflag [#allocation3], %s230
        %s232 = sand.u32 %s31, 1
        %s233 = smul.addr %s232, 8
        %s234 = scalar_lea.vmem [#allocation2], %s233
        // Predicated region
        $region41: #{tpu_custom_call.1} parent=39 // pred_check
          %p235 = pneg %p44
        $region42: #{tpu_custom_call.1} parent=39 // pred_check_branch
          %237 = sbr.rel (%p235) target = $region44
        $region43: #{tpu_custom_call.1} parent=39 // pred_region
          %238 = dma.done %s231, 128
        $region44: #{tpu_custom_call.1} parent=39 // pred_fallthru
          _
        // Predicated region
        $region45: #{tpu_custom_call.1} parent=39 // pred_check
          %p239 = pneg %p65
        $region46: #{tpu_custom_call.1} parent=39 // pred_check_branch
          %241 = sbr.rel (%p239) target = $region48
        $region47: #{tpu_custom_call.1} parent=39 // pred_region
          %242 = dma.done [#allocation6], 2048
        $region48: #{tpu_custom_call.1} parent=39 // pred_fallthru
          _
        // Predicated region
        $region49: #{tpu_custom_call.1} parent=39 // pred_check
          %p243 = pneg %p107
        $region50: #{tpu_custom_call.1} parent=39 // pred_check_branch
          %245 = sbr.rel (%p243) target = $region52
        $region51: #{tpu_custom_call.1} parent=39 // pred_region
          %246 = dma.done [#allocation6], 4096
        $region52: #{tpu_custom_call.1} parent=39 // pred_fallthru
          _
        %s247 = sand.u32 %s31, 1
        %s248 = scalar_lea.sflag [#allocation3], %s247
        %s249 = sand.u32 %s31, 1
        %s250 = smul.addr %s249, 8
        %s251 = scalar_lea.vmem [#allocation2], %s250
        %p252 = pneg %p44
        %p253 = pneg %p41
        %p254 = pneg %p65
        %p255 = pneg %p62
        %p256 = pneg %p86
        %p257 = pneg %p83
        %p258 = pneg %p107
        %p259 = pneg %p104
        %p260 = pneg %p128
        %p261 = pneg %p125
        %p262 = pneg %p154
        %p263 = pneg %p151
        %s264 = sand.u32 %s141, 1
        %s265 = scalar_lea.sflag [#allocation4], %s264
        %s266 = sand.u32 %s141, 1
        %s267 = smul.addr %s266, 8
        %s268 = scalar_lea.vmem [#allocation8], %s267
        %v270 = vld [vmem:[%s234] sm:$0xff]
        %v271 = vpack.c.bf16 %v270, %v270
        %v272 = vld [vmem:[#allocation5] sm:$0xff]
        %v273 = vld [vmem:[#allocation5 + $0x8] sm:$0xff]
        %v274 = vld [vmem:[#allocation5 + $0x10] sm:$0xff]
        %v275 = vld [vmem:[#allocation5 + $0x18] sm:$0xff]
        %v276 = vld [vmem:[#allocation5 + $0x20] sm:$0xff]
        %v277 = vld [vmem:[#allocation5 + $0x28] sm:$0xff]
        %v278 = vld [vmem:[#allocation5 + $0x30] sm:$0xff]
        %v279 = vld [vmem:[#allocation5 + $0x38] sm:$0xff]
        %v280 = vld [vmem:[#allocation5 + $0x40] sm:$0xff]
        %v281 = vld [vmem:[#allocation5 + $0x48] sm:$0xff]
        %v282 = vld [vmem:[#allocation5 + $0x50] sm:$0xff]
        %v283 = vld [vmem:[#allocation5 + $0x58] sm:$0xff]
        %v284 = vld [vmem:[#allocation5 + $0x60] sm:$0xff]
        %v285 = vld [vmem:[#allocation5 + $0x68] sm:$0xff]
        %v286 = vld [vmem:[#allocation5 + $0x70] sm:$0xff]
        %v287 = vld [vmem:[#allocation5 + $0x78] sm:$0xff]
        %v288 = vld [vmem:[%s2] sm:$0x3]
        %v290 = vlaneseq
        %v291 = vshrl.u32 %v290, 7
        %v292 = vsub.s32 0, %v291
        %v293 = vrot.slane %v288, %v292
        %v294 = vlaneseq
        %v295 = vshrl.u32 %v294, 7
        %v296 = vsub.s32 1, %v295
        %v297 = vrot.slane %v288, %v296
        %v316 = vunpack.c.l.b16 %v272
        %v317 = vunpack.c.h.b16 %v272
        %v318 = vunpack.c.l.b16 %v273
        %v319 = vunpack.c.h.b16 %v273
        %v320 = vunpack.c.l.b16 %v274
        %v321 = vunpack.c.h.b16 %v274
        %v322 = vunpack.c.l.b16 %v275
        %v323 = vunpack.c.h.b16 %v275
        %v324 = vunpack.c.l.b16 %v276
        %v325 = vunpack.c.h.b16 %v276
        %v326 = vunpack.c.l.b16 %v277
        %v327 = vunpack.c.h.b16 %v277
        %v328 = vunpack.c.l.b16 %v278
        %v329 = vunpack.c.h.b16 %v278
        %v330 = vunpack.c.l.b16 %v279
        %v331 = vunpack.c.h.b16 %v279
        %v332 = vunpack.c.l.b16 %v280
        %v333 = vunpack.c.h.b16 %v280
        %v334 = vunpack.c.l.b16 %v281
        %v335 = vunpack.c.h.b16 %v281
        %v336 = vunpack.c.l.b16 %v282
        %v337 = vunpack.c.h.b16 %v282
        %v338 = vunpack.c.l.b16 %v283
        %v339 = vunpack.c.h.b16 %v283
        %v340 = vunpack.c.l.b16 %v284
        %v341 = vunpack.c.h.b16 %v284
        %v342 = vunpack.c.l.b16 %v285
        %v343 = vunpack.c.h.b16 %v285
        %v344 = vunpack.c.l.b16 %v286
        %v345 = vunpack.c.h.b16 %v286
        %v346 = vunpack.c.l.b16 %v287
        %v347 = vunpack.c.h.b16 %v287
        %v348 = vpack.c.b16 %v318, %v316
        %v349 = vpack.c.b16 %v319, %v317
        %v350 = vpack.c.b16 %v322, %v320
        %v351 = vpack.c.b16 %v323, %v321
        %v352 = vpack.c.b16 %v326, %v324
        %v353 = vpack.c.b16 %v327, %v325
        %v354 = vpack.c.b16 %v330, %v328
        %v355 = vpack.c.b16 %v331, %v329
        %v356 = vpack.c.b16 %v334, %v332
        %v357 = vpack.c.b16 %v335, %v333
        %v358 = vpack.c.b16 %v338, %v336
        %v359 = vpack.c.b16 %v339, %v337
        %v360 = vpack.c.b16 %v342, %v340
        %v361 = vpack.c.b16 %v343, %v341
        %v362 = vpack.c.b16 %v346, %v344
        %v363 = vpack.c.b16 %v347, %v345
        %380 = vmatprep.subr.bf16.mxu0 %v349
        %381 = vmatpush1.bf16.msra.mxu0 %v348
        %382 = vmatprep.subr.bf16.mxu0 %v351
        %383 = vmatpush1.bf16.msra.mxu0 %v350
        %384 = vmatprep.subr.bf16.mxu0 %v353
        %385 = vmatpush1.bf16.msra.mxu0 %v352
        %386 = vmatprep.subr.bf16.mxu0 %v355
        %387 = vmatpush1.bf16.msra.mxu0 %v354
        %388 = vmatprep.subr.bf16.mxu0 %v357
        %389 = vmatpush1.bf16.msra.mxu0 %v356
        %390 = vmatprep.subr.bf16.mxu0 %v359
        %391 = vmatpush1.bf16.msra.mxu0 %v358
        %392 = vmatprep.subr.bf16.mxu0 %v361
        %393 = vmatpush1.bf16.msra.mxu0 %v360
        %394 = vmatprep.subr.bf16.mxu0 %v363
        %395 = vmatpush1.bf16.msra.mxu0 %v362
        %396 = vmatprep.subr.bf16.mxu0 0
        %397 = vmatpush1.bf16.msra.mxu0 0
        %398 = vmatprep.subr.bf16.mxu0 0
        %399 = vmatpush1.bf16.msra.mxu0 0
        %400 = vmatprep.subr.bf16.mxu0 0
        %401 = vmatpush1.bf16.msra.mxu0 0
        %402 = vmatprep.subr.bf16.mxu0 0
        %403 = vmatpush1.bf16.msra.mxu0 0
        %404 = vmatprep.subr.bf16.mxu0 0
        %405 = vmatpush1.bf16.msra.mxu0 0
        %406 = vmatprep.subr.bf16.mxu0 0
        %407 = vmatpush1.bf16.msra.mxu0 0
        %408 = vmatprep.subr.bf16.mxu0 0
        %409 = vmatpush1.bf16.msra.mxu0 0
        %410 = vmatprep.subr.bf16.mxu0 0
        %411 = vmatpush1.bf16.msra.mxu0 0
        %412 = vmatprep.mubr.bf16.mxu0 0
        %413 = vmatmul.mubr.bf16.gmra.mrb[0].mxu0 %v271
        %v414 = vpop.f32.mrb[0].mxu0
        %v415 = vadd.f32 %v293, %v414
        %v416 = vpop.f32.mrb[0].mxu0
        %v417 = vadd.f32 %v297, %v416
        %v418 = vpop.f32.mrb[0].mxu0
        %v419 = vpop.f32.mrb[0].mxu0
        %420 = vdwg.mxu0
        %v421 = vmul.f32 %v415, 0.5
        %v422 = vmul.f32 %v417, 0.5
        %v423 = vmul.f32 %v415, 0.044715
        %v424 = vmul.f32 %v417, 0.044715
        %v425 = vmul.f32 %v423, %v415
        %v426 = vmul.f32 %v424, %v417
        %v427 = vmul.f32 %v425, %v415
        %v428 = vmul.f32 %v426, %v417
        %v429 = vadd.f32 %v415, %v427
        %v430 = vadd.f32 %v417, %v428
        %v431 = vmul.f32 %v429, 0.7978846
        %v432 = vmul.f32 %v430, 0.7978846
        %v433 = vtanh.pop %v431
        %v434 = vtanh.pop %v432
        %v435 = vadd.f32 %v433, 1.0
        %v436 = vadd.f32 %v434, 1.0
        %v437 = vmul.f32 %v421, %v435
        %v438 = vmul.f32 %v422, %v436
        %v439 = vpack.c.bf16 %v437, %v437
        %v440 = vpack.c.bf16 %v438, %v438
        %v441 = vld [vmem:[#allocation7] sm:$0xff]
        %v442 = vld [vmem:[#allocation7 + $0x8] sm:$0xff]
        %v443 = vld [vmem:[#allocation7 + $0x10] sm:$0xff]
        %v444 = vld [vmem:[#allocation7 + $0x18] sm:$0xff]
        %v445 = vld [vmem:[#allocation7 + $0x20] sm:$0xff]
        %v446 = vld [vmem:[#allocation7 + $0x28] sm:$0xff]
        %v447 = vld [vmem:[#allocation7 + $0x30] sm:$0xff]
        %v448 = vld [vmem:[#allocation7 + $0x38] sm:$0xff]
        %v449 = vld [vmem:[#allocation7 + $0x40] sm:$0xff]
        %v450 = vld [vmem:[#allocation7 + $0x48] sm:$0xff]
        %v451 = vld [vmem:[#allocation7 + $0x50] sm:$0xff]
        %v452 = vld [vmem:[#allocation7 + $0x58] sm:$0xff]
        %v453 = vld [vmem:[#allocation7 + $0x60] sm:$0xff]
        %v454 = vld [vmem:[#allocation7 + $0x68] sm:$0xff]
        %v455 = vld [vmem:[#allocation7 + $0x70] sm:$0xff]
        %v456 = vld [vmem:[#allocation7 + $0x78] sm:$0xff]
        %v457 = vld [vmem:[#allocation7 + $0x80] sm:$0xff]
        %v458 = vld [vmem:[#allocation7 + $0x88] sm:$0xff]
        %v459 = vld [vmem:[#allocation7 + $0x90] sm:$0xff]
        %v460 = vld [vmem:[#allocation7 + $0x98] sm:$0xff]
        %v461 = vld [vmem:[#allocation7 + $0xa0] sm:$0xff]
        %v462 = vld [vmem:[#allocation7 + $0xa8] sm:$0xff]
        %v463 = vld [vmem:[#allocation7 + $0xb0] sm:$0xff]
        %v464 = vld [vmem:[#allocation7 + $0xb8] sm:$0xff]
        %v465 = vld [vmem:[#allocation7 + $0xc0] sm:$0xff]
        %v466 = vld [vmem:[#allocation7 + $0xc8] sm:$0xff]
        %v467 = vld [vmem:[#allocation7 + $0xd0] sm:$0xff]
        %v468 = vld [vmem:[#allocation7 + $0xd8] sm:$0xff]
        %v469 = vld [vmem:[#allocation7 + $0xe0] sm:$0xff]
        %v470 = vld [vmem:[#allocation7 + $0xe8] sm:$0xff]
        %v471 = vld [vmem:[#allocation7 + $0xf0] sm:$0xff]
        %v472 = vld [vmem:[#allocation7 + $0xf8] sm:$0xff]
        %v473 = vld [vmem:[%s4] sm:$0x3]
        %v475 = vlaneseq
        %v476 = vshrl.u32 %v475, 7
        %v477 = vsub.s32 0, %v476
        %v478 = vrot.slane %v473, %v477
        %v479 = vlaneseq
        %v480 = vshrl.u32 %v479, 7
        %v481 = vsub.s32 1, %v480
        %v482 = vrot.slane %v473, %v481
        %v517 = vunpack.c.l.b16 %v441
        %v518 = vunpack.c.h.b16 %v441
        %v519 = vunpack.c.l.b16 %v442
        %v520 = vunpack.c.h.b16 %v442
        %v521 = vunpack.c.l.b16 %v443
        %v522 = vunpack.c.h.b16 %v443
        %v523 = vunpack.c.l.b16 %v444
        %v524 = vunpack.c.h.b16 %v444
        %v525 = vunpack.c.l.b16 %v445
        %v526 = vunpack.c.h.b16 %v445
        %v527 = vunpack.c.l.b16 %v446
        %v528 = vunpack.c.h.b16 %v446
        %v529 = vunpack.c.l.b16 %v447
        %v530 = vunpack.c.h.b16 %v447
        %v531 = vunpack.c.l.b16 %v448
        %v532 = vunpack.c.h.b16 %v448
        %v533 = vunpack.c.l.b16 %v449
        %v534 = vunpack.c.h.b16 %v449
        %v535 = vunpack.c.l.b16 %v450
        %v536 = vunpack.c.h.b16 %v450
        %v537 = vunpack.c.l.b16 %v451
        %v538 = vunpack.c.h.b16 %v451
        %v539 = vunpack.c.l.b16 %v452
        %v540 = vunpack.c.h.b16 %v452
        %v541 = vunpack.c.l.b16 %v453
        %v542 = vunpack.c.h.b16 %v453
        %v543 = vunpack.c.l.b16 %v454
        %v544 = vunpack.c.h.b16 %v454
        %v545 = vunpack.c.l.b16 %v455
        %v546 = vunpack.c.h.b16 %v455
        %v547 = vunpack.c.l.b16 %v456
        %v548 = vunpack.c.h.b16 %v456
        %v549 = vunpack.c.l.b16 %v457
        %v550 = vunpack.c.h.b16 %v457
        %v551 = vunpack.c.l.b16 %v458
        %v552 = vunpack.c.h.b16 %v458
        %v553 = vunpack.c.l.b16 %v459
        %v554 = vunpack.c.h.b16 %v459
        %v555 = vunpack.c.l.b16 %v460
        %v556 = vunpack.c.h.b16 %v460
        %v557 = vunpack.c.l.b16 %v461
        %v558 = vunpack.c.h.b16 %v461
        %v559 = vunpack.c.l.b16 %v462
        %v560 = vunpack.c.h.b16 %v462
        %v561 = vunpack.c.l.b16 %v463
        %v562 = vunpack.c.h.b16 %v463
        %v563 = vunpack.c.l.b16 %v464
        %v564 = vunpack.c.h.b16 %v464
        %v565 = vunpack.c.l.b16 %v465
        %v566 = vunpack.c.h.b16 %v465
        %v567 = vunpack.c.l.b16 %v466
        %v568 = vunpack.c.h.b16 %v466
        %v569 = vunpack.c.l.b16 %v467
        %v570 = vunpack.c.h.b16 %v467
        %v571 = vunpack.c.l.b16 %v468
        %v572 = vunpack.c.h.b16 %v468
        %v573 = vunpack.c.l.b16 %v469
        %v574 = vunpack.c.h.b16 %v469
        %v575 = vunpack.c.l.b16 %v470
        %v576 = vunpack.c.h.b16 %v470
        %v577 = vunpack.c.l.b16 %v471
        %v578 = vunpack.c.h.b16 %v471
        %v579 = vunpack.c.l.b16 %v472
        %v580 = vunpack.c.h.b16 %v472
        %v581 = vpack.c.b16 %v519, %v517
        %v582 = vpack.c.b16 %v520, %v518
        %v583 = vpack.c.b16 %v523, %v521
        %v584 = vpack.c.b16 %v524, %v522
        %v585 = vpack.c.b16 %v527, %v525
        %v586 = vpack.c.b16 %v528, %v526
        %v587 = vpack.c.b16 %v531, %v529
        %v588 = vpack.c.b16 %v532, %v530
        %v589 = vpack.c.b16 %v535, %v533
        %v590 = vpack.c.b16 %v536, %v534
        %v591 = vpack.c.b16 %v539, %v537
        %v592 = vpack.c.b16 %v540, %v538
        %v593 = vpack.c.b16 %v543, %v541
        %v594 = vpack.c.b16 %v544, %v542
        %v595 = vpack.c.b16 %v547, %v545
        %v596 = vpack.c.b16 %v548, %v546
        %v597 = vpack.c.b16 %v551, %v549
        %v598 = vpack.c.b16 %v552, %v550
        %v599 = vpack.c.b16 %v555, %v553
        %v600 = vpack.c.b16 %v556, %v554
        %v601 = vpack.c.b16 %v559, %v557
        %v602 = vpack.c.b16 %v560, %v558
        %v603 = vpack.c.b16 %v563, %v561
        %v604 = vpack.c.b16 %v564, %v562
        %v605 = vpack.c.b16 %v567, %v565
        %v606 = vpack.c.b16 %v568, %v566
        %v607 = vpack.c.b16 %v571, %v569
        %v608 = vpack.c.b16 %v572, %v570
        %v609 = vpack.c.b16 %v575, %v573
        %v610 = vpack.c.b16 %v576, %v574
        %v611 = vpack.c.b16 %v579, %v577
        %v612 = vpack.c.b16 %v580, %v578
        %645 = vmatprep.subr.bf16.mxu0 %v582
        %646 = vmatpush1.bf16.msra.mxu0 %v581
        %647 = vmatprep.subr.bf16.mxu0 %v584
        %648 = vmatpush1.bf16.msra.mxu0 %v583
        %649 = vmatprep.subr.bf16.mxu0 %v586
        %650 = vmatpush1.bf16.msra.mxu0 %v585
        %651 = vmatprep.subr.bf16.mxu0 %v588
        %652 = vmatpush1.bf16.msra.mxu0 %v587
        %653 = vmatprep.subr.bf16.mxu0 %v590
        %654 = vmatpush1.bf16.msra.mxu0 %v589
        %655 = vmatprep.subr.bf16.mxu0 %v592
        %656 = vmatpush1.bf16.msra.mxu0 %v591
        %657 = vmatprep.subr.bf16.mxu0 %v594
        %658 = vmatpush1.bf16.msra.mxu0 %v593
        %659 = vmatprep.subr.bf16.mxu0 %v596
        %660 = vmatpush1.bf16.msra.mxu0 %v595
        %661 = vmatprep.subr.bf16.mxu0 %v598
        %662 = vmatpush1.bf16.msra.mxu0 %v597
        %663 = vmatprep.subr.bf16.mxu0 %v600
        %664 = vmatpush1.bf16.msra.mxu0 %v599
        %665 = vmatprep.subr.bf16.mxu0 %v602
        %666 = vmatpush1.bf16.msra.mxu0 %v601
        %667 = vmatprep.subr.bf16.mxu0 %v604
        %668 = vmatpush1.bf16.msra.mxu0 %v603
        %669 = vmatprep.subr.bf16.mxu0 %v606
        %670 = vmatpush1.bf16.msra.mxu0 %v605
        %671 = vmatprep.subr.bf16.mxu0 %v608
        %672 = vmatpush1.bf16.msra.mxu0 %v607
        %673 = vmatprep.subr.bf16.mxu0 %v610
        %674 = vmatpush1.bf16.msra.mxu0 %v609
        %675 = vmatprep.subr.bf16.mxu0 %v612
        %676 = vmatpush1.bf16.msra.mxu0 %v611
        %677 = vmatprep.mubr.bf16.mxu0 %v440
        %678 = vmatmul.mubr.bf16.gmra.mrb[0].mxu0 %v439
        %v679 = vpop.f32.mrb[0].mxu0
        %v680 = vadd.f32 %v478, %v679
        %v681 = vpop.f32.mrb[0].mxu0
        %v682 = vadd.f32 %v482, %v681
        %v683 = vpop.f32.mrb[0].mxu0
        %v684 = vpop.f32.mrb[0].mxu0
        %685 = vdwg.mxu0
        %v686 = vsub.f32 0.0, %v682
        %v687 = vmul.f32 %v686, 1.442695
        %v688 = vpow.pop %v687
        %v689 = vadd.f32 %v688, 1.0
        %v690 = vrcp.pop %v689
        %v691 = vmul.f32 1.0, %v690
        %v692 = vmul.f32 %v680, %v691
        %693 = vst [vmem:[%s268] sm:$0xff] %v692
        %s694 = sand.u32 %s141, 1
        %s695 = scalar_lea.sflag [#allocation4], %s694
        %s696 = sand.u32 %s141, 1
        %s697 = smul.addr %s696, 8
        %s698 = scalar_lea.vmem [#allocation8], %s697
        // Predicated region
        $region53: #{tpu_custom_call.1} parent=39 // pred_check
          %p699 = pneg %p151
        $region54: #{tpu_custom_call.1} parent=39 // pred_check_branch
          %701 = sbr.rel (%p699) target = $region56
        $region55: #{tpu_custom_call.1} parent=39 // pred_region
          %s703 = ssub.s32 128, 128
          %704 = vsyncadd %s695, %s703
          %s705 = smul.addr %s23, 128
          %s706 = scalar_lea.hbm %s5, %s705
          %s708 = sshll.u32 %s698, 4
          %s709 = int_to_ptr.vmem [resolvable:$true] %s708
          %711 = dma.vmem_to_hbm [thread:$0]  %s709, 128, %s706, %s695
        $region56: #{tpu_custom_call.1} parent=39 // pred_fallthru
          _
      $region40: #{tpu_custom_call.1} parent=5 // pred_fallthru
        _
      %p712 = scmp.le.s32.totalorder 2, %s18
      // Predicated region
      $region57: #{tpu_custom_call.1} parent=5 // pred_check
        %p713 = pneg %p712
      $region58: #{tpu_custom_call.1} parent=5 // pred_check_branch
        %715 = sbr.rel (%p713) target = $region60
      $region59: #{tpu_custom_call.1} parent=5 // pred_region
        %s716 = ssub.s32 %s18, 2
        // Predicated region
        $region61: #{tpu_custom_call.1} parent=59 // pred_check
          %p717 = pneg %p157
        $region62: #{tpu_custom_call.1} parent=59 // pred_check_branch
          %719 = sbr.rel (%p717) target = $region64
        $region63: #{tpu_custom_call.1} parent=59 // pred_region
          %s720 = sand.u32 %s142, 1
          %s721 = scalar_lea.sflag [#allocation4], %s720
          %s722 = sand.u32 %s142, 1
          %s723 = smul.addr %s722, 8
          %s724 = scalar_lea.vmem [#allocation8], %s723
          %725 = dma.done %s721, 128
        $region64: #{tpu_custom_call.1} parent=59 // pred_fallthru
          _
      $region60: #{tpu_custom_call.1} parent=5 // pred_fallthru
        _
    $region6: #{tpu_custom_call.1} parent=1 // loop_footer
      %s22 = sadd.s32 1, %s18
    $region7: #{tpu_custom_call.1} parent=1 // loop_footer_branch
      %17 = sbr.rel target = $region3
    $region8: #{tpu_custom_call.1} parent=1 // loop_exit
      _
    %726 = vsyncpa [#allocation3], 1
    %s727 = scalar_lea.sflag [#allocation3], 1
    %728 = vsyncpa %s727, 1
    %729 = vsyncpa [#allocation6], 1
    %730 = vsyncpa [#allocation4], 1
    %s731 = scalar_lea.sflag [#allocation4], 1
    %732 = vsyncpa %s731, 1

</llo_original>
